<compile_context>
chip_gen: v7x
topology: tpu7x:2x2x1
jax: 0.10.0
libtpu: 0.0.40
codegen_flags: <defaults>
</compile_context>

<pallas_src>
import jax
import jax.numpy as jnp
from jax.experimental import pallas as pl
from jax.experimental.pallas import tpu as pltpu


def qfunc_kernel(obs_ref, act_ref, w1o_ref, w1a_ref, b1_ref,
                 w2_ref, b2_ref, w3_ref, b3_ref, out_ref):
    # Layer 1, concat fused:  [H1,obs_dim]@[obs_dim,TB] + [H1,act_dim]@[act_dim,TB]
    h = jnp.dot(w1o_ref[...], obs_ref[...], preferred_element_type=jnp.float32)
    h = h + jnp.dot(w1a_ref[...], act_ref[...], preferred_element_type=jnp.float32)
    h = jnp.maximum(h + b1_ref[...], 0.0)                        # [H1, TB]
    # Layer 2: [H2, H1] @ [H1, TB]
    h = jnp.dot(w2_ref[...], h, preferred_element_type=jnp.float32)
    h = jnp.maximum(h + b2_ref[...], 0.0)                        # [H2, TB]
    # Output layer: N=1 matmul replaced by VPU multiply + sublane reduce (XLU).
    q = jnp.sum(h * w3_ref[...], axis=0, keepdims=True)          # [1, TB]
    out_ref[...] = q + b3_ref[0, 0]


def mlp_q_forward(obs, act, params, *, tile_b=256):
    """obs: [B, obs_dim], act: [B, act_dim] -> q: [B]. params in PyTorch layout
    (weight [out, in], bias [out])."""
    w1, b1, w2, b2, w3, b3 = params
    B, obs_dim = obs.shape
    act_dim = act.shape[-1]
    H1, H2 = w1.shape[0], w2.shape[0]
    D = obs_dim + act_dim

    n_tiles = pl.cdiv(B, tile_b)
    B_pad = n_tiles * tile_b

    # Layout plumbing (wrapper-side glue): batch -> lane (last) dimension.
    obs_t = jnp.pad(obs.astype(jnp.float32).T, ((0, 0), (0, B_pad - B)))
    act_t = jnp.pad(act.astype(jnp.float32).T, ((0, 0), (0, B_pad - B)))
    w1o = w1[:, :obs_dim].astype(jnp.float32)        # [H1, obs_dim]
    w1a = w1[:, obs_dim:].astype(jnp.float32)        # [H1, act_dim]
    b1c = b1.reshape(H1, 1).astype(jnp.float32)
    w2f = w2.astype(jnp.float32)                     # [H2, H1]
    b2c = b2.reshape(H2, 1).astype(jnp.float32)
    w3c = w3.reshape(H2, 1).astype(jnp.float32)      # [1, H2] row -> column
    b3s = b3.reshape(1, 1).astype(jnp.float32)       # scalar, goes to SMEM

    const = lambda shape: pl.BlockSpec(shape, lambda i: (0, 0))

    flops = 2 * B_pad * (D * H1 + H1 * H2 + H2)
    bytes_accessed = 4 * (B_pad * (D + 1) + H1 * D + H2 * H1 + H1 + 2 * H2 + 1)

    q_pad = pl.pallas_call(
        qfunc_kernel,
        out_shape=jax.ShapeDtypeStruct((1, B_pad), jnp.float32),
        grid=(n_tiles,),
        in_specs=[
            pl.BlockSpec((obs_dim, tile_b), lambda i: (0, i)),    # obs tile (pipelined)
            pl.BlockSpec((act_dim, tile_b), lambda i: (0, i)),    # act tile (pipelined)
            const((H1, obs_dim)),                                  # W1[:, :obs_dim]
            const((H1, act_dim)),                                  # W1[:, obs_dim:]
            const((H1, 1)),                                        # b1
            const((H2, H1)),                                       # W2
            const((H2, 1)),                                        # b2
            const((H2, 1)),                                        # w3 column
            pl.BlockSpec((1, 1), lambda i: (0, 0),
                         memory_space=pltpu.MemorySpace.SMEM),     # b3 scalar
        ],
        out_specs=pl.BlockSpec((1, tile_b), lambda i: (0, i)),     # lane-dense output
        compiler_params=pltpu.CompilerParams(
            dimension_semantics=("parallel",)),
        cost_estimate=pl.CostEstimate(
            flops=flops, transcendentals=0, bytes_accessed=bytes_accessed),
    )(obs_t, act_t, w1o, w1a, b1c, w2f, b2c, w3c, b3s)

    # Glue: drop batch padding; equivalent of torch.squeeze(q, -1).
    return q_pad[0, :B]


def init_linear(key, fan_in, fan_out):
    """Deterministic PyTorch-nn.Linear-style init; weight stored as [out, in]."""
    kw, kb = jax.random.split(key)
    bound = 1.0 / jnp.sqrt(jnp.float32(fan_in))
    w = jax.random.uniform(kw, (fan_out, fan_in), jnp.float32, -bound, bound)
    b = jax.random.uniform(kb, (fan_out,), jnp.float32, -bound, bound)
    return w, b


def init_params(key, obs_dim, act_dim, hidden_sizes):
    sizes = [obs_dim + act_dim] + list(hidden_sizes) + [1]
    keys = jax.random.split(key, len(sizes) - 1)
    params = []
    for j in range(len(sizes) - 1):
        w, b = init_linear(keys[j], sizes[j], sizes[j + 1])
        params += [w, b]
    return tuple(params)


if __name__ == "__main__":
    key = jax.random.PRNGKey(0)
    k_obs, k_act, k_params = jax.random.split(key, 3)

    B, obs_dim, act_dim = 8, 8, 4
    hidden_sizes = (32, 32)

    obs = jax.random.normal(k_obs, (B, obs_dim), jnp.float32)
    act = jax.random.normal(k_act, (B, act_dim), jnp.float32)
    params = init_params(k_params, obs_dim, act_dim, hidden_sizes)

    q = mlp_q_forward(obs, act, params)
    jax.block_until_ready(q)

    # Pure-JAX reference (same math as the PyTorch module; weights [out, in]).
    w1, b1, w2, b2, w3, b3 = params
    x = jnp.concatenate([obs, act], axis=-1)
    ref = jnp.maximum(x @ w1.T + b1, 0.0)
    ref = jnp.maximum(ref @ w2.T + b2, 0.0)
    ref = jnp.squeeze(ref @ w3.T + b3, -1)

    assert q.shape == (B,)
    assert jnp.allclose(q, ref, atol=1e-4, rtol=1e-4), float(jnp.max(jnp.abs(q - ref)))

    print("KERNEL_OK")
</pallas_src>

<mosaic_0001>
module attributes {stable_mosaic.version = 11 : i64} {
  func.func @qfunc_kernel(%arg0: i32, %arg1: memref<8x256xf32, #tpu.memory_space<vmem>>, %arg2: memref<4x256xf32, #tpu.memory_space<vmem>>, %arg3: memref<32x8xf32, #tpu.memory_space<vmem>>, %arg4: memref<32x4xf32, #tpu.memory_space<vmem>>, %arg5: memref<32x1xf32, #tpu.memory_space<vmem>>, %arg6: memref<32x32xf32, #tpu.memory_space<vmem>>, %arg7: memref<32x1xf32, #tpu.memory_space<vmem>>, %arg8: memref<32x1xf32, #tpu.memory_space<vmem>>, %arg9: memref<1x1xf32, #tpu.memory_space<smem>>, %arg10: memref<1x256xf32, #tpu.memory_space<vmem>>) attributes {dimension_semantics = [#tpu.dimension_semantics<parallel>], iteration_bounds = array<i64: 1>, scalar_prefetch = 0 : i64, scratch_operands = 0 : i64, tpu.core_type = #tpu.core_type<tc>, window_params = [{transform_indices = @transform_0, window_bounds = array<i64: 8, 256>}, {transform_indices = @transform_1, window_bounds = array<i64: 4, 256>}, {pipeline_mode = #tpu.pipeline_mode<synchronous>, transform_indices = @transform_2, window_bounds = array<i64: 32, 8>}, {pipeline_mode = #tpu.pipeline_mode<synchronous>, transform_indices = @transform_3, window_bounds = array<i64: 32, 4>}, {pipeline_mode = #tpu.pipeline_mode<synchronous>, transform_indices = @transform_4, window_bounds = array<i64: 32, 1>}, {pipeline_mode = #tpu.pipeline_mode<synchronous>, transform_indices = @transform_5, window_bounds = array<i64: 32, 32>}, {pipeline_mode = #tpu.pipeline_mode<synchronous>, transform_indices = @transform_6, window_bounds = array<i64: 32, 1>}, {pipeline_mode = #tpu.pipeline_mode<synchronous>, transform_indices = @transform_7, window_bounds = array<i64: 32, 1>}, {transform_indices = @transform_8, window_bounds = array<i64: 1, 1>}, {transform_indices = @transform_9, window_bounds = array<i64: 1, 256>}]} {
    %c0 = arith.constant 0 : index
    %c0_0 = arith.constant 0 : index
    %0 = vector.load %arg3[%c0, %c0_0] : memref<32x8xf32, #tpu.memory_space<vmem>>, vector<32x8xf32>
    %c0_1 = arith.constant 0 : index
    %c0_2 = arith.constant 0 : index
    %1 = vector.load %arg1[%c0_1, %c0_2] : memref<8x256xf32, #tpu.memory_space<vmem>>, vector<8x256xf32>
    %cst = arith.constant dense<0.000000e+00> : vector<32x256xf32>
    %2 = tpu.matmul %0, %1, %cst {dimension_numbers = #tpu.dot_dimension_numbers<[1], [0], [0], [1], [0, 0, 1, 1], [], []>} : vector<32x8xf32>, vector<8x256xf32>, vector<32x256xf32> -> vector<32x256xf32>
    %c0_3 = arith.constant 0 : index
    %c0_4 = arith.constant 0 : index
    %3 = vector.load %arg4[%c0_3, %c0_4] : memref<32x4xf32, #tpu.memory_space<vmem>>, vector<32x4xf32>
    %c0_5 = arith.constant 0 : index
    %c0_6 = arith.constant 0 : index
    %4 = vector.load %arg2[%c0_5, %c0_6] : memref<4x256xf32, #tpu.memory_space<vmem>>, vector<4x256xf32>
    %cst_7 = arith.constant dense<0.000000e+00> : vector<32x256xf32>
    %5 = tpu.matmul %3, %4, %cst_7 {dimension_numbers = #tpu.dot_dimension_numbers<[1], [0], [0], [1], [0, 0, 1, 1], [], []>} : vector<32x4xf32>, vector<4x256xf32>, vector<32x256xf32> -> vector<32x256xf32>
    %6 = arith.addf %2, %5 : vector<32x256xf32>
    %c0_8 = arith.constant 0 : index
    %c0_9 = arith.constant 0 : index
    %7 = vector.load %arg5[%c0_8, %c0_9] : memref<32x1xf32, #tpu.memory_space<vmem>>, vector<32x1xf32>
    %8 = vector.broadcast %7 : vector<32x1xf32> to vector<32x256xf32>
    %9 = arith.addf %6, %8 : vector<32x256xf32>
    %cst_10 = arith.constant 0.000000e+00 : f32
    %10 = vector.broadcast %cst_10 : f32 to vector<32x256xf32>
    %11 = arith.maximumf %9, %10 : vector<32x256xf32>
    %c0_11 = arith.constant 0 : index
    %c0_12 = arith.constant 0 : index
    %12 = vector.load %arg6[%c0_11, %c0_12] : memref<32x32xf32, #tpu.memory_space<vmem>>, vector<32x32xf32>
    %cst_13 = arith.constant dense<0.000000e+00> : vector<32x256xf32>
    %13 = tpu.matmul %12, %11, %cst_13 {dimension_numbers = #tpu.dot_dimension_numbers<[1], [0], [0], [1], [0, 0, 1, 1], [], []>} : vector<32x32xf32>, vector<32x256xf32>, vector<32x256xf32> -> vector<32x256xf32>
    %c0_14 = arith.constant 0 : index
    %c0_15 = arith.constant 0 : index
    %14 = vector.load %arg7[%c0_14, %c0_15] : memref<32x1xf32, #tpu.memory_space<vmem>>, vector<32x1xf32>
    %15 = vector.broadcast %14 : vector<32x1xf32> to vector<32x256xf32>
    %16 = arith.addf %13, %15 : vector<32x256xf32>
    %cst_16 = arith.constant 0.000000e+00 : f32
    %17 = vector.broadcast %cst_16 : f32 to vector<32x256xf32>
    %18 = arith.maximumf %16, %17 : vector<32x256xf32>
    %c0_17 = arith.constant 0 : index
    %c0_18 = arith.constant 0 : index
    %19 = vector.load %arg8[%c0_17, %c0_18] : memref<32x1xf32, #tpu.memory_space<vmem>>, vector<32x1xf32>
    %20 = vector.broadcast %19 : vector<32x1xf32> to vector<32x256xf32>
    %21 = arith.mulf %18, %20 : vector<32x256xf32>
    %cst_19 = arith.constant dense<0.000000e+00> : vector<256xf32>
    %22 = vector.multi_reduction <add>, %21, %cst_19 [0] : vector<32x256xf32> to vector<256xf32>
    %23 = vector.shape_cast %22 : vector<256xf32> to vector<1x256xf32>
    %c0_20 = arith.constant 0 : index
    %c0_21 = arith.constant 0 : index
    %24 = memref.load %arg9[%c0_20, %c0_21] : memref<1x1xf32, #tpu.memory_space<smem>>
    %25 = vector.broadcast %24 : f32 to vector<1x256xf32>
    %26 = arith.addf %23, %25 : vector<1x256xf32>
    %c0_22 = arith.constant 0 : index
    %c0_23 = arith.constant 0 : index
    %27 = vector.load %arg10[%c0_22, %c0_23] : memref<1x256xf32, #tpu.memory_space<vmem>>, vector<1x256xf32>
    tpu.vector_store %arg10[%c0_22, %c0_23], %26 {strides = array<i32>} : memref<1x256xf32, #tpu.memory_space<vmem>>, vector<1x256xf32>,
    return
  }
  func.func @transform_0(%arg0: i32) -> (i32, i32) {
    %c0_i32 = arith.constant 0 : i32
    %c0_i32_0 = arith.constant 0 : i32
    return %c0_i32, %arg0 : i32, i32
  }
  func.func @transform_1(%arg0: i32) -> (i32, i32) {
    %c0_i32 = arith.constant 0 : i32
    %c0_i32_0 = arith.constant 0 : i32
    return %c0_i32, %arg0 : i32, i32
  }
  func.func @transform_2(%arg0: i32) -> (i32, i32) {
    %c0_i32 = arith.constant 0 : i32
    %c0_i32_0 = arith.constant 0 : i32
    %c0_i32_1 = arith.constant 0 : i32
    return %c0_i32, %c0_i32_0 : i32, i32
  }
  func.func @transform_3(%arg0: i32) -> (i32, i32) {
    %c0_i32 = arith.constant 0 : i32
    %c0_i32_0 = arith.constant 0 : i32
    %c0_i32_1 = arith.constant 0 : i32
    return %c0_i32, %c0_i32_0 : i32, i32
  }
  func.func @transform_4(%arg0: i32) -> (i32, i32) {
    %c0_i32 = arith.constant 0 : i32
    %c0_i32_0 = arith.constant 0 : i32
    %c0_i32_1 = arith.constant 0 : i32
    return %c0_i32, %c0_i32_0 : i32, i32
  }
  func.func @transform_5(%arg0: i32) -> (i32, i32) {
    %c0_i32 = arith.constant 0 : i32
    %c0_i32_0 = arith.constant 0 : i32
    %c0_i32_1 = arith.constant 0 : i32
    return %c0_i32, %c0_i32_0 : i32, i32
  }
  func.func @transform_6(%arg0: i32) -> (i32, i32) {
    %c0_i32 = arith.constant 0 : i32
    %c0_i32_0 = arith.constant 0 : i32
    %c0_i32_1 = arith.constant 0 : i32
    return %c0_i32, %c0_i32_0 : i32, i32
  }
  func.func @transform_7(%arg0: i32) -> (i32, i32) {
    %c0_i32 = arith.constant 0 : i32
    %c0_i32_0 = arith.constant 0 : i32
    %c0_i32_1 = arith.constant 0 : i32
    return %c0_i32, %c0_i32_0 : i32, i32
  }
  func.func @transform_8(%arg0: i32) -> (i32, i32) {
    %c0_i32 = arith.constant 0 : i32
    %c0_i32_0 = arith.constant 0 : i32
    %c0_i32_1 = arith.constant 0 : i32
    return %c0_i32, %c0_i32_0 : i32, i32
  }
  func.func @transform_9(%arg0: i32) -> (i32, i32) {
    %c0_i32 = arith.constant 0 : i32
    %c0_i32_0 = arith.constant 0 : i32
    return %c0_i32, %arg0 : i32, i32
  }
}

</mosaic_0001>

<llo_original>
// kernel: tpu_custom_call.1
$region0: #{tpu_custom_call.1}
  #allocation0 [shape = 'u32[]', space=smem, size = 0x4, offset = 0x4, fixed_abs, tag = 'smem constant byte address 0x4 - core index']
  #allocation1 [shape = 'u32[144,128]{1,0:T(1,128)}', space=vmem, size = 0x12000, scoped, tag = 'internal scratch']
  #allocation2 [shape = 'f32[1,1]{1,0:T(1,128)S(6)}', space=smem, size = 0x200, scoped, tag = 'scoped memory for tpu_custom_call.1']
  %s0 = inlined_call_operand.vmem [shape: f32[8,256], index: 0, kind: input, shape index: {}]
  %s1 = inlined_call_operand.vmem [shape: f32[4,256], index: 1, kind: input, shape index: {}]
  %s2 = inlined_call_operand.vmem [shape: f32[32,8], index: 2, kind: input, shape index: {}]
  %s3 = inlined_call_operand.vmem [shape: f32[32,4], index: 3, kind: input, shape index: {}]
  %s4 = inlined_call_operand.vmem [shape: f32[32,1], index: 4, kind: input, shape index: {}]
  %s5 = inlined_call_operand.vmem [shape: f32[32,32], index: 5, kind: input, shape index: {}]
  %s6 = inlined_call_operand.vmem [shape: f32[32,1], index: 6, kind: input, shape index: {}]
  %s7 = inlined_call_operand.vmem [shape: f32[32,1], index: 7, kind: input, shape index: {}]
  %s8 = inlined_call_operand.<no memory space> [shape: f32[1,1], index: 8, kind: input, shape index: {}]
  %s9 = inlined_call_operand.hbm [shape: f32[1,256], index: 9, kind: output, shape index: {}]
  %s10 = sld [smem:[#allocation0]]
  $region46: #{tpu_custom_call.1} parent=0
    _
  %s12 = ssub.s32 1, %s10
  %s13 = scalar_select 0, %s12, %s10
  %14 = sst [smem:[#allocation2]] %s8
  $region1: #{tpu_custom_call.1} parent=0
    #allocation3 [shape = 'u8[1024]{0}', space=vmem, size = 0x400, scoped, tag = 'output window, operand 0, single buffered']
    #allocation4 [shape = 's32[1]{0}', space=sflag, size = 0x4, scoped, tag = 'scoped memory for tpu_custom_call.1']
    %15 = vsyncpa [#allocation4], 0
    // Predicated region
    $region2: #{tpu_custom_call.1} parent=1 // pred_check
      _
    $region3: #{tpu_custom_call.1} parent=1 // pred_check_branch
      %17 = sbr.rel (0) target = $region5
    $region4: #{tpu_custom_call.1} parent=1 // pred_region
      _
    $region5: #{tpu_custom_call.1} parent=1 // pred_fallthru
      _
    // Predicated region
    $region6: #{tpu_custom_call.1} parent=1 // pred_check
      _
    $region7: #{tpu_custom_call.1} parent=1 // pred_check_branch
      %19 = sbr.rel (0) target = $region9
    $region8: #{tpu_custom_call.1} parent=1 // pred_region
      _
    $region9: #{tpu_custom_call.1} parent=1 // pred_fallthru
      _
    // Predicated region
    $region10: #{tpu_custom_call.1} parent=1 // pred_check
      _
    $region11: #{tpu_custom_call.1} parent=1 // pred_check_branch
      %21 = sbr.rel (0) target = $region13
    $region12: #{tpu_custom_call.1} parent=1 // pred_region
      _
    $region13: #{tpu_custom_call.1} parent=1 // pred_fallthru
      _
    // Predicated region
    $region14: #{tpu_custom_call.1} parent=1 // pred_check
      _
    $region15: #{tpu_custom_call.1} parent=1 // pred_check_branch
      %23 = sbr.rel (0) target = $region17
    $region16: #{tpu_custom_call.1} parent=1 // pred_region
      _
    $region17: #{tpu_custom_call.1} parent=1 // pred_fallthru
      _
    // Predicated region
    $region18: #{tpu_custom_call.1} parent=1 // pred_check
      _
    $region19: #{tpu_custom_call.1} parent=1 // pred_check_branch
      %25 = sbr.rel (0) target = $region21
    $region20: #{tpu_custom_call.1} parent=1 // pred_region
      _
    $region21: #{tpu_custom_call.1} parent=1 // pred_fallthru
      _
    // Predicated region
    $region22: #{tpu_custom_call.1} parent=1 // pred_check
      _
    $region23: #{tpu_custom_call.1} parent=1 // pred_check_branch
      %27 = sbr.rel (0) target = $region25
    $region24: #{tpu_custom_call.1} parent=1 // pred_region
      _
    $region25: #{tpu_custom_call.1} parent=1 // pred_fallthru
      _
    // Predicated region
    $region26: #{tpu_custom_call.1} parent=1 // pred_check
      _
    $region27: #{tpu_custom_call.1} parent=1 // pred_check_branch
      %29 = sbr.rel (0) target = $region29
    $region28: #{tpu_custom_call.1} parent=1 // pred_region
      _
    $region29: #{tpu_custom_call.1} parent=1 // pred_fallthru
      _
    // Predicated region
    $region30: #{tpu_custom_call.1} parent=1 // pred_check
      _
    $region31: #{tpu_custom_call.1} parent=1 // pred_check_branch
      %31 = sbr.rel (0) target = $region33
    $region32: #{tpu_custom_call.1} parent=1 // pred_region
      _
    $region33: #{tpu_custom_call.1} parent=1 // pred_fallthru
      _
    // Predicated region
    $region34: #{tpu_custom_call.1} parent=1 // pred_check
      _
    $region35: #{tpu_custom_call.1} parent=1 // pred_check_branch
      %33 = sbr.rel (0) target = $region37
    $region36: #{tpu_custom_call.1} parent=1 // pred_region
      _
    $region37: #{tpu_custom_call.1} parent=1 // pred_fallthru
      _
    %v34 = vld [vmem:[%s2] sm:$0xff]
    %v35 = vld [vmem:[%s2 + $0x8] sm:$0xff]
    %v36 = vld [vmem:[%s2 + $0x10] sm:$0xff]
    %v37 = vld [vmem:[%s2 + $0x18] sm:$0xff]
    %v38 = vld [vmem:[%s0] sm:$0xff]
    %v39 = vld [vmem:[%s0 + $0x8] sm:$0xff]
    %v40 = vld [vmem:[%s3] sm:$0xff]
    %v41 = vld [vmem:[%s3 + $0x8] sm:$0xff]
    %v42 = vld [vmem:[%s3 + $0x10] sm:$0xff]
    %v43 = vld [vmem:[%s3 + $0x18] sm:$0xff]
    %v44 = vld [vmem:[%s1] sm:$0xff]
    %v46 = vcombine.high %v44, %v44
    %vm47 = vcmask 31744
    %v49 = vsel %vm47, %v40, 0
    %v52 = vsel %vm47, %v41, 0
    %v55 = vsel %vm47, %v42, 0
    %v58 = vsel %vm47, %v43, 0
    %vm60 = vcmask 1043456
    %v61 = vsel %vm60, %v44, 0
    %v63 = vsel %vm60, %v46, 0
    %65 = vmatprep.subr.mxu0 %v63
    %66 = vmatpush1.msra.mxu0 %v61
    %67 = vmatprep.subr.mxu0 0.0
    %68 = vmatpush1.msra.mxu0 0.0
    %69 = vmatprep.subr.mxu0 0.0
    %70 = vmatpush1.msra.mxu0 0.0
    %71 = vmatprep.subr.mxu0 0.0
    %72 = vmatpush1.msra.mxu0 0.0
    %73 = vmatprep.subr.mxu0 0.0
    %74 = vmatpush1.msra.mxu0 0.0
    %75 = vmatprep.subr.mxu0 0.0
    %76 = vmatpush1.msra.mxu0 0.0
    %77 = vmatprep.subr.mxu0 0.0
    %78 = vmatpush1.msra.mxu0 0.0
    %79 = vmatprep.subr.mxu0 0.0
    %80 = vmatpush1.msra.mxu0 0.0
    %81 = vmatprep.subr.mxu0 0.0
    %82 = vmatpush1.msra.mxu0 0.0
    %83 = vmatprep.subr.mxu0 0.0
    %84 = vmatpush1.msra.mxu0 0.0
    %85 = vmatprep.subr.mxu0 0.0
    %86 = vmatpush1.msra.mxu0 0.0
    %87 = vmatprep.subr.mxu0 0.0
    %88 = vmatpush1.msra.mxu0 0.0
    %89 = vmatprep.subr.mxu0 0.0
    %90 = vmatpush1.msra.mxu0 0.0
    %91 = vmatprep.subr.mxu0 0.0
    %92 = vmatpush1.msra.mxu0 0.0
    %93 = vmatprep.subr.mxu0 0.0
    %94 = vmatpush1.msra.mxu0 0.0
    %95 = vmatprep.subr.mxu0 0.0
    %96 = vmatpush1.msra.mxu0 0.0
    %97 = vmatprep.subr.mxu0 0.0
    %98 = vmatpush1.msra.mxu0 0.0
    %99 = vmatprep.subr.mxu0 0.0
    %100 = vmatpush1.msra.mxu0 0.0
    %101 = vmatprep.subr.mxu0 0.0
    %102 = vmatpush1.msra.mxu0 0.0
    %103 = vmatprep.subr.mxu0 0.0
    %104 = vmatpush1.msra.mxu0 0.0
    %105 = vmatprep.subr.mxu0 0.0
    %106 = vmatpush1.msra.mxu0 0.0
    %107 = vmatprep.subr.mxu0 0.0
    %108 = vmatpush1.msra.mxu0 0.0
    %109 = vmatprep.subr.mxu0 0.0
    %110 = vmatpush1.msra.mxu0 0.0
    %111 = vmatprep.subr.mxu0 0.0
    %112 = vmatpush1.msra.mxu0 0.0
    %113 = vmatprep.subr.mxu0 0.0
    %114 = vmatpush1.msra.mxu0 0.0
    %115 = vmatprep.subr.mxu0 0.0
    %116 = vmatpush1.msra.mxu0 0.0
    %117 = vmatprep.subr.mxu0 0.0
    %118 = vmatpush1.msra.mxu0 0.0
    %119 = vmatprep.subr.mxu0 0.0
    %120 = vmatpush1.msra.mxu0 0.0
    %121 = vmatprep.subr.mxu0 0.0
    %122 = vmatpush1.msra.mxu0 0.0
    %123 = vmatprep.subr.mxu0 0.0
    %124 = vmatpush1.msra.mxu0 0.0
    %125 = vmatprep.subr.mxu0 0.0
    %126 = vmatpush1.msra.mxu0 0.0
    %127 = vmatprep.subr.mxu0 0.0
    %128 = vmatpush1.msra.mxu0 0.0
    %129 = vmatprep.mubr.f32.mxu0 0.0
    %130 = vmatmul.mubr.f32.gmra.mrb[0].mxu0 %v49
    %v131 = vpop.f32.mrb[0].mxu0
    %v132 = vadd.f32 0.0, %v131
    %v133 = vpop.f32.mrb[0].mxu0
    %v134 = vadd.f32 0.0, %v133
    %135 = vmatprep.mubr.f32.mxu0 0.0
    %136 = vmatmul.mubr.f32.gmra.mrb[0].mxu0 %v52
    %v137 = vpop.f32.mrb[0].mxu0
    %v138 = vadd.f32 0.0, %v137
    %v139 = vpop.f32.mrb[0].mxu0
    %v140 = vadd.f32 0.0, %v139
    %141 = vmatprep.mubr.f32.mxu0 0.0
    %142 = vmatmul.mubr.f32.gmra.mrb[0].mxu0 %v55
    %v143 = vpop.f32.mrb[0].mxu0
    %v144 = vadd.f32 0.0, %v143
    %v145 = vpop.f32.mrb[0].mxu0
    %v146 = vadd.f32 0.0, %v145
    %147 = vmatprep.mubr.f32.mxu0 0.0
    %148 = vmatmul.mubr.f32.gmra.mrb[0].mxu0 %v58
    %v149 = vpop.f32.mrb[0].mxu0
    %v150 = vadd.f32 0.0, %v149
    %v151 = vpop.f32.mrb[0].mxu0
    %v152 = vadd.f32 0.0, %v151
    %153 = vdwg.mxu0
    %vm154 = vcmask 64512
    %v156 = vsel %vm154, %v34, 0
    %v159 = vsel %vm154, %v35, 0
    %v162 = vsel %vm154, %v36, 0
    %v165 = vsel %vm154, %v37, 0
    %167 = vmatprep.subr.mxu0 %v39
    %168 = vmatpush1.msra.mxu0 %v38
    %169 = vmatprep.subr.mxu0 0.0
    %170 = vmatpush1.msra.mxu0 0.0
    %171 = vmatprep.subr.mxu0 0.0
    %172 = vmatpush1.msra.mxu0 0.0
    %173 = vmatprep.subr.mxu0 0.0
    %174 = vmatpush1.msra.mxu0 0.0
    %175 = vmatprep.subr.mxu0 0.0
    %176 = vmatpush1.msra.mxu0 0.0
    %177 = vmatprep.subr.mxu0 0.0
    %178 = vmatpush1.msra.mxu0 0.0
    %179 = vmatprep.subr.mxu0 0.0
    %180 = vmatpush1.msra.mxu0 0.0
    %181 = vmatprep.subr.mxu0 0.0
    %182 = vmatpush1.msra.mxu0 0.0
    %183 = vmatprep.subr.mxu0 0.0
    %184 = vmatpush1.msra.mxu0 0.0
    %185 = vmatprep.subr.mxu0 0.0
    %186 = vmatpush1.msra.mxu0 0.0
    %187 = vmatprep.subr.mxu0 0.0
    %188 = vmatpush1.msra.mxu0 0.0
    %189 = vmatprep.subr.mxu0 0.0
    %190 = vmatpush1.msra.mxu0 0.0
    %191 = vmatprep.subr.mxu0 0.0
    %192 = vmatpush1.msra.mxu0 0.0
    %193 = vmatprep.subr.mxu0 0.0
    %194 = vmatpush1.msra.mxu0 0.0
    %195 = vmatprep.subr.mxu0 0.0
    %196 = vmatpush1.msra.mxu0 0.0
    %197 = vmatprep.subr.mxu0 0.0
    %198 = vmatpush1.msra.mxu0 0.0
    %199 = vmatprep.subr.mxu0 0.0
    %200 = vmatpush1.msra.mxu0 0.0
    %201 = vmatprep.subr.mxu0 0.0
    %202 = vmatpush1.msra.mxu0 0.0
    %203 = vmatprep.subr.mxu0 0.0
    %204 = vmatpush1.msra.mxu0 0.0
    %205 = vmatprep.subr.mxu0 0.0
    %206 = vmatpush1.msra.mxu0 0.0
    %207 = vmatprep.subr.mxu0 0.0
    %208 = vmatpush1.msra.mxu0 0.0
    %209 = vmatprep.subr.mxu0 0.0
    %210 = vmatpush1.msra.mxu0 0.0
    %211 = vmatprep.subr.mxu0 0.0
    %212 = vmatpush1.msra.mxu0 0.0
    %213 = vmatprep.subr.mxu0 0.0
    %214 = vmatpush1.msra.mxu0 0.0
    %215 = vmatprep.subr.mxu0 0.0
    %216 = vmatpush1.msra.mxu0 0.0
    %217 = vmatprep.subr.mxu0 0.0
    %218 = vmatpush1.msra.mxu0 0.0
    %219 = vmatprep.subr.mxu0 0.0
    %220 = vmatpush1.msra.mxu0 0.0
    %221 = vmatprep.subr.mxu0 0.0
    %222 = vmatpush1.msra.mxu0 0.0
    %223 = vmatprep.subr.mxu0 0.0
    %224 = vmatpush1.msra.mxu0 0.0
    %225 = vmatprep.subr.mxu0 0.0
    %226 = vmatpush1.msra.mxu0 0.0
    %227 = vmatprep.subr.mxu0 0.0
    %228 = vmatpush1.msra.mxu0 0.0
    %229 = vmatprep.subr.mxu0 0.0
    %230 = vmatpush1.msra.mxu0 0.0
    %231 = vmatprep.mubr.f32.mxu0 0.0
    %232 = vmatmul.mubr.f32.gmra.mrb[0].mxu0 %v156
    %v233 = vpop.f32.mrb[0].mxu0
    %v234 = vadd.f32 %v132, %v233
    %v235 = vpop.f32.mrb[0].mxu0
    %v236 = vadd.f32 %v134, %v235
    %237 = vmatprep.mubr.f32.mxu0 0.0
    %238 = vmatmul.mubr.f32.gmra.mrb[0].mxu0 %v159
    %v239 = vpop.f32.mrb[0].mxu0
    %v240 = vadd.f32 %v138, %v239
    %v241 = vpop.f32.mrb[0].mxu0
    %v242 = vadd.f32 %v140, %v241
    %243 = vmatprep.mubr.f32.mxu0 0.0
    %244 = vmatmul.mubr.f32.gmra.mrb[0].mxu0 %v162
    %v245 = vpop.f32.mrb[0].mxu0
    %v246 = vadd.f32 %v144, %v245
    %v247 = vpop.f32.mrb[0].mxu0
    %v248 = vadd.f32 %v146, %v247
    %249 = vmatprep.mubr.f32.mxu0 0.0
    %250 = vmatmul.mubr.f32.gmra.mrb[0].mxu0 %v165
    %v251 = vpop.f32.mrb[0].mxu0
    %v252 = vadd.f32 %v150, %v251
    %v253 = vpop.f32.mrb[0].mxu0
    %v254 = vadd.f32 %v152, %v253
    %255 = vdwg.mxu0
    %v256 = vld [vmem:[%s4] sm:$0xff]
    %v257 = vld [vmem:[%s4 + $0x8] sm:$0xff]
    %v258 = vld [vmem:[%s4 + $0x10] sm:$0xff]
    %v259 = vld [vmem:[%s4 + $0x18] sm:$0xff]
    %261 = vset.pattern.permute.xlu0 0
    %262 = vperm.xlu0 %261, %v256
    %v263 = vpop.permute.xlu0 %262
    %266 = vset.pattern.permute.xlu0 0
    %267 = vperm.xlu0 %266, %v257
    %v268 = vpop.permute.xlu0 %267
    %271 = vset.pattern.permute.xlu0 0
    %272 = vperm.xlu0 %271, %v258
    %v273 = vpop.permute.xlu0 %272
    %276 = vset.pattern.permute.xlu0 0
    %277 = vperm.xlu0 %276, %v259
    %v278 = vpop.permute.xlu0 %277
    %v280 = vadd.f32 %v234, %v263
    %v281 = vadd.f32 %v236, %v263
    %v282 = vadd.f32 %v240, %v268
    %v283 = vadd.f32 %v242, %v268
    %v284 = vadd.f32 %v246, %v273
    %v285 = vadd.f32 %v248, %v273
    %v286 = vadd.f32 %v252, %v278
    %v287 = vadd.f32 %v254, %v278
    %v288 = vmax.f32 %v280, 0.0
    %v289 = vmax.f32 %v281, 0.0
    %v290 = vmax.f32 %v282, 0.0
    %v291 = vmax.f32 %v283, 0.0
    %v292 = vmax.f32 %v284, 0.0
    %v293 = vmax.f32 %v285, 0.0
    %v294 = vmax.f32 %v286, 0.0
    %v295 = vmax.f32 %v287, 0.0
    %v296 = vld [vmem:[%s5] sm:$0xff]
    %v297 = vld [vmem:[%s5 + $0x8] sm:$0xff]
    %v298 = vld [vmem:[%s5 + $0x10] sm:$0xff]
    %v299 = vld [vmem:[%s5 + $0x18] sm:$0xff]
    %v300 = vld [vmem:[%s6] sm:$0xff]
    %v301 = vld [vmem:[%s6 + $0x8] sm:$0xff]
    %v302 = vld [vmem:[%s6 + $0x10] sm:$0xff]
    %v303 = vld [vmem:[%s6 + $0x18] sm:$0xff]
    %305 = vset.pattern.permute.xlu0 0
    %306 = vperm.xlu0 %305, %v300
    %v307 = vpop.permute.xlu0 %306
    %310 = vset.pattern.permute.xlu0 0
    %311 = vperm.xlu0 %310, %v301
    %v312 = vpop.permute.xlu0 %311
    %315 = vset.pattern.permute.xlu0 0
    %316 = vperm.xlu0 %315, %v302
    %v317 = vpop.permute.xlu0 %316
    %320 = vset.pattern.permute.xlu0 0
    %321 = vperm.xlu0 %320, %v303
    %v322 = vpop.permute.xlu0 %321
    %vm324 = vcmask 261120
    %v326 = vsel %vm324, %v296, 0
    %v329 = vsel %vm324, %v297, 0
    %v332 = vsel %vm324, %v298, 0
    %v335 = vsel %vm324, %v299, 0
    %337 = vmatprep.subr.mxu0 %v289
    %338 = vmatpush1.msra.mxu0 %v288
    %339 = vmatprep.subr.mxu0 %v291
    %340 = vmatpush1.msra.mxu0 %v290
    %341 = vmatprep.subr.mxu0 %v293
    %342 = vmatpush1.msra.mxu0 %v292
    %343 = vmatprep.subr.mxu0 %v295
    %344 = vmatpush1.msra.mxu0 %v294
    %345 = vmatprep.subr.mxu0 0.0
    %346 = vmatpush1.msra.mxu0 0.0
    %347 = vmatprep.subr.mxu0 0.0
    %348 = vmatpush1.msra.mxu0 0.0
    %349 = vmatprep.subr.mxu0 0.0
    %350 = vmatpush1.msra.mxu0 0.0
    %351 = vmatprep.subr.mxu0 0.0
    %352 = vmatpush1.msra.mxu0 0.0
    %353 = vmatprep.subr.mxu0 0.0
    %354 = vmatpush1.msra.mxu0 0.0
    %355 = vmatprep.subr.mxu0 0.0
    %356 = vmatpush1.msra.mxu0 0.0
    %357 = vmatprep.subr.mxu0 0.0
    %358 = vmatpush1.msra.mxu0 0.0
    %359 = vmatprep.subr.mxu0 0.0
    %360 = vmatpush1.msra.mxu0 0.0
    %361 = vmatprep.subr.mxu0 0.0
    %362 = vmatpush1.msra.mxu0 0.0
    %363 = vmatprep.subr.mxu0 0.0
    %364 = vmatpush1.msra.mxu0 0.0
    %365 = vmatprep.subr.mxu0 0.0
    %366 = vmatpush1.msra.mxu0 0.0
    %367 = vmatprep.subr.mxu0 0.0
    %368 = vmatpush1.msra.mxu0 0.0
    %369 = vmatprep.subr.mxu0 0.0
    %370 = vmatpush1.msra.mxu0 0.0
    %371 = vmatprep.subr.mxu0 0.0
    %372 = vmatpush1.msra.mxu0 0.0
    %373 = vmatprep.subr.mxu0 0.0
    %374 = vmatpush1.msra.mxu0 0.0
    %375 = vmatprep.subr.mxu0 0.0
    %376 = vmatpush1.msra.mxu0 0.0
    %377 = vmatprep.subr.mxu0 0.0
    %378 = vmatpush1.msra.mxu0 0.0
    %379 = vmatprep.subr.mxu0 0.0
    %380 = vmatpush1.msra.mxu0 0.0
    %381 = vmatprep.subr.mxu0 0.0
    %382 = vmatpush1.msra.mxu0 0.0
    %383 = vmatprep.subr.mxu0 0.0
    %384 = vmatpush1.msra.mxu0 0.0
    %385 = vmatprep.subr.mxu0 0.0
    %386 = vmatpush1.msra.mxu0 0.0
    %387 = vmatprep.subr.mxu0 0.0
    %388 = vmatpush1.msra.mxu0 0.0
    %389 = vmatprep.subr.mxu0 0.0
    %390 = vmatpush1.msra.mxu0 0.0
    %391 = vmatprep.subr.mxu0 0.0
    %392 = vmatpush1.msra.mxu0 0.0
    %393 = vmatprep.subr.mxu0 0.0
    %394 = vmatpush1.msra.mxu0 0.0
    %395 = vmatprep.subr.mxu0 0.0
    %396 = vmatpush1.msra.mxu0 0.0
    %397 = vmatprep.subr.mxu0 0.0
    %398 = vmatpush1.msra.mxu0 0.0
    %399 = vmatprep.subr.mxu0 0.0
    %400 = vmatpush1.msra.mxu0 0.0
    %401 = vmatprep.mubr.f32.mxu0 0.0
    %402 = vmatmul.mubr.f32.gmra.mrb[0].mxu0 %v326
    %v403 = vpop.f32.mrb[0].mxu0
    %v404 = vadd.f32 %v307, %v403
    %v405 = vpop.f32.mrb[0].mxu0
    %v406 = vadd.f32 %v307, %v405
    %407 = vmatprep.mubr.f32.mxu0 0.0
    %408 = vmatmul.mubr.f32.gmra.mrb[0].mxu0 %v329
    %v409 = vpop.f32.mrb[0].mxu0
    %v410 = vadd.f32 %v312, %v409
    %v411 = vpop.f32.mrb[0].mxu0
    %v412 = vadd.f32 %v312, %v411
    %413 = vmatprep.mubr.f32.mxu0 0.0
    %414 = vmatmul.mubr.f32.gmra.mrb[0].mxu0 %v332
    %v415 = vpop.f32.mrb[0].mxu0
    %v416 = vadd.f32 %v317, %v415
    %v417 = vpop.f32.mrb[0].mxu0
    %v418 = vadd.f32 %v317, %v417
    %419 = vmatprep.mubr.f32.mxu0 0.0
    %420 = vmatmul.mubr.f32.gmra.mrb[0].mxu0 %v335
    %v421 = vpop.f32.mrb[0].mxu0
    %v422 = vadd.f32 %v322, %v421
    %v423 = vpop.f32.mrb[0].mxu0
    %v424 = vadd.f32 %v322, %v423
    %425 = vdwg.mxu0
    %v426 = vmax.f32 %v404, 0.0
    %v427 = vmax.f32 %v406, 0.0
    %v428 = vmax.f32 %v410, 0.0
    %v429 = vmax.f32 %v412, 0.0
    %v430 = vmax.f32 %v416, 0.0
    %v431 = vmax.f32 %v418, 0.0
    %v432 = vmax.f32 %v422, 0.0
    %v433 = vmax.f32 %v424, 0.0
    %v434 = vld [vmem:[%s7] sm:$0xff]
    %v435 = vld [vmem:[%s7 + $0x8] sm:$0xff]
    %v436 = vld [vmem:[%s7 + $0x10] sm:$0xff]
    %v437 = vld [vmem:[%s7 + $0x18] sm:$0xff]
    %439 = vset.pattern.permute.xlu0 0
    %440 = vperm.xlu0 %439, %v434
    %v441 = vpop.permute.xlu0 %440
    %444 = vset.pattern.permute.xlu0 0
    %445 = vperm.xlu0 %444, %v435
    %v446 = vpop.permute.xlu0 %445
    %449 = vset.pattern.permute.xlu0 0
    %450 = vperm.xlu0 %449, %v436
    %v451 = vpop.permute.xlu0 %450
    %454 = vset.pattern.permute.xlu0 0
    %455 = vperm.xlu0 %454, %v437
    %v456 = vpop.permute.xlu0 %455
    %v458 = vmul.f32 %v426, %v441
    %v459 = vmul.f32 %v427, %v441
    %v460 = vmul.f32 %v428, %v446
    %v461 = vmul.f32 %v429, %v446
    %v462 = vmul.f32 %v430, %v451
    %v463 = vmul.f32 %v431, %v451
    %v464 = vmul.f32 %v432, %v456
    %v465 = vmul.f32 %v433, %v456
    %v466 = vadd.f32 %v458, %v460
    %v467 = vadd.f32 %v466, %v462
    %v468 = vadd.f32 %v467, %v464
    %v469 = vrot.slane %v468, 4
    %v470 = vadd.f32 %v468, %v469
    %v471 = vrot.slane %v470, 2
    %v472 = vadd.f32 %v470, %v471
    %v473 = vrot.slane %v472, 1
    %v474 = vadd.f32 %v472, %v473
    %v475 = vadd.f32 %v459, %v461
    %v476 = vadd.f32 %v475, %v463
    %v477 = vadd.f32 %v476, %v465
    %v478 = vrot.slane %v477, 4
    %v479 = vadd.f32 %v477, %v478
    %v480 = vrot.slane %v479, 2
    %v481 = vadd.f32 %v479, %v480
    %v482 = vrot.slane %v481, 1
    %v483 = vadd.f32 %v481, %v482
    %s484 = sld [smem:[#allocation2]]
    %v485 = vstv %s484
    %v486 = vadd.f32 %v474, %v485
    %v487 = vadd.f32 %v483, %v485
    %v490 = vcombine.low %v486, %v487
    %v492 = vunpack.c.l.s4 1966171168
    %v493 = vunpack.c.0.s8 %v492
    %v494 = vlaneseq
    %v495 = vshrl.u32 %v494, 7
    %v496 = vsub.s32 %v493, %v495
    %v497 = vrot.slane %v490, %v496
    %v499 = vunpack.c.l.s4 1966171168
    %v500 = vunpack.c.0.s8 %v499
    %v501 = vlaneseq
    %v502 = vshrl.u32 %v501, 7
    %v503 = vsub.s32 %v500, %v502
    %v504 = vrot.slane %v497, %v503
    %v506 = vlaneseq
    %vm507 = vcmp.ge.s32.totalorder %v506, 0
    %vm508 = vcmp.lt.s32.totalorder %v506, 256
    %vm509 = vmand %vm507, %vm508
    %510 = vst.msk [vmem:[#allocation3] sm:$0x3] %vm509, %v504
    // Predicated region
    $region38: #{tpu_custom_call.1} parent=1 // pred_check
      _
    $region39: #{tpu_custom_call.1} parent=1 // pred_check_branch
      %512 = sbr.rel (0) target = $region41
    $region40: #{tpu_custom_call.1} parent=1 // pred_region
      %s514 = ssub.s32 32, 32
      %515 = vsyncadd [#allocation4], %s514
      %s517 = sshll.u32 [#allocation3], 4
      %s518 = int_to_ptr.vmem [resolvable:$true] %s517
      %520 = dma.vmem_to_hbm [thread:$0]  %s518, 32, %s9, [#allocation4]
    $region41: #{tpu_custom_call.1} parent=1 // pred_fallthru
      _
    // Predicated region
    $region42: #{tpu_custom_call.1} parent=1 // pred_check
      _
    $region43: #{tpu_custom_call.1} parent=1 // pred_check_branch
      %522 = sbr.rel (0) target = $region45
    $region44: #{tpu_custom_call.1} parent=1 // pred_region
      %523 = dma.done [#allocation4], 32
    $region45: #{tpu_custom_call.1} parent=1 // pred_fallthru
      _
    %524 = vsyncpa [#allocation4], 1

</llo_original>
